<compile_context>
chip_gen: v5e
topology: v5e:2x2
jax: 0.10.0
libtpu: 0.0.40
codegen_flags: <defaults>
</compile_context>

<pallas_src>
import functools

import jax
import jax.numpy as jnp
import numpy as np
from jax.experimental import pallas as pl
from jax.experimental.pallas import tpu as pltpu


def _round_up(x, m):
    return ((x + m - 1) // m) * m


def _f1_partial_kernel(y_pred_ref, y_true_ref, tp_ref, ps_ref, *, classes):
    # Blocks (class-major, lane-dense):
    #   y_pred_ref : (C, tile)  logits, native dtype
    #   y_true_ref : (1, tile)  int32 labels; padded columns hold `classes`
    #   tp_ref     : (C, tile)  resident acc: sum over tiles of 1[y==c] * p
    #   ps_ref     : (C, tile)  resident acc: sum over tiles of p
    @pl.when(pl.program_id(1) == 0)
    def _init():
        tp_ref[...] = jnp.zeros_like(tp_ref)
        ps_ref[...] = jnp.zeros_like(ps_ref)

    logits = y_pred_ref[...].astype(jnp.float32)             # (C, tile)
    labels = y_true_ref[...]                                 # (1, tile) int32

    # numerically-stable softmax over the class (sublane) axis
    m = jnp.max(logits, axis=0, keepdims=True)               # (1, tile)
    e = jnp.exp(logits - m)                                  # (C, tile)  EUP
    den = jnp.sum(e, axis=0, keepdims=True)                  # (1, tile)
    inv = pl.reciprocal(den, approx=True)                    # EUP vrcp
    inv = inv * (2.0 - den * inv)                            # 1 Newton step
    p = e * inv                                              # (C, tile)

    # one-hot hit mask from a tiny (C, 1) sublane iota vs the (1, tile) labels
    cls = jax.lax.broadcasted_iota(jnp.int32, (classes, 1), 0)
    hit = labels == cls                                      # (C, tile) bool

    tp_ref[...] += jnp.where(hit, p, 0.0)
    ps_ref[...] += p


def f1_loss(y_pred, y_true, classes=18, epsilon=1e-7, tile_n=2048,
            num_splits=None):
    assert y_pred.ndim == 2
    assert y_true.ndim == 1
    n, c = y_pred.shape
    assert c == classes

    # lane tile: multiple of 128, capped at the (padded) batch size
    tile = max(128, min(_round_up(tile_n, 128), _round_up(n, 128)))
    if num_splits is None:
        # leading parallel axis -> both TensorCores on v7x (no-op on v5e/v6e)
        num_splits = 2 if _round_up(n, tile) // tile >= 2 else 1
    n_pad = _round_up(n, tile * num_splits)
    tiles_per_split = n_pad // (tile * num_splits)

    # class-major (lane-dense) layout; zero-pad logits, out-of-range pad labels
    y_pred_cm = jnp.transpose(y_pred)                        # (C, N)
    y_true_row = y_true.astype(jnp.int32).reshape(1, n)
    if n_pad != n:
        y_pred_cm = jnp.pad(y_pred_cm, ((0, 0), (0, n_pad - n)))
        y_true_row = jnp.pad(y_true_row, ((0, 0), (0, n_pad - n)),
                             constant_values=classes)

    kernel = functools.partial(_f1_partial_kernel, classes=classes)

    def in_map(p, i):
        return (0, p * tiles_per_split + i)

    acc_spec = pl.BlockSpec((None, c, tile), lambda p, i: (p, 0, 0))
    tp_part, ps_part = pl.pallas_call(
        kernel,
        out_shape=(
            jax.ShapeDtypeStruct((num_splits, c, tile), jnp.float32),
            jax.ShapeDtypeStruct((num_splits, c, tile), jnp.float32),
        ),
        grid_spec=pltpu.PrefetchScalarGridSpec(
            num_scalar_prefetch=0,
            grid=(num_splits, tiles_per_split),
            in_specs=[
                pl.BlockSpec((c, tile), in_map),
                pl.BlockSpec((1, tile), in_map),
            ],
            out_specs=[acc_spec, acc_spec],
        ),
        compiler_params=pltpu.CompilerParams(
            dimension_semantics=("parallel", "arbitrary")),
    )(y_pred_cm, y_true_row)

    # O(C) finalize in plain JAX
    tp = jnp.sum(tp_part, axis=(0, 2))                       # (C,)
    psum = jnp.sum(ps_part, axis=(0, 2))                     # tp + fp (+ pad)
    # zero-logit pad columns each contribute a uniform 1/C per class to sum(p)
    psum = psum - (n_pad - n) / classes
    cnt = jnp.bincount(y_true, length=classes).astype(jnp.float32)  # tp + fn

    precision = tp / (psum + epsilon)
    recall = tp / (cnt + epsilon)
    f1 = 2.0 * (precision * recall) / (precision + recall + epsilon)
    f1 = jnp.clip(f1, epsilon, 1.0 - epsilon)
    return 1.0 - jnp.mean(f1)


def _f1_loss_ref(y_pred, y_true, classes=18, epsilon=1e-7):
    """Pure-JAX reference mirroring the PyTorch module."""
    y_true_oh = jax.nn.one_hot(y_true, classes, dtype=jnp.float32)
    p = jax.nn.softmax(y_pred.astype(jnp.float32), axis=1)
    tp = jnp.sum(y_true_oh * p, axis=0)
    fp = jnp.sum((1.0 - y_true_oh) * p, axis=0)
    fn = jnp.sum(y_true_oh * (1.0 - p), axis=0)
    precision = tp / (tp + fp + epsilon)
    recall = tp / (tp + fn + epsilon)
    f1 = 2.0 * (precision * recall) / (precision + recall + epsilon)
    f1 = jnp.clip(f1, epsilon, 1.0 - epsilon)
    return 1.0 - jnp.mean(f1)


if __name__ == "__main__":
    CLASSES = 18

    # case 1: tiny batch (single grid step, single split)
    N = 8
    k_pred, k_true = jax.random.split(jax.random.PRNGKey(0))
    y_pred = jax.random.normal(k_pred, (N, CLASSES), dtype=jnp.float32)
    y_true = jax.random.randint(k_true, (N,), 0, CLASSES, dtype=jnp.int32)
    loss = f1_loss(y_pred, y_true, classes=CLASSES, epsilon=1e-7)
    jax.block_until_ready(loss)
    ref = _f1_loss_ref(y_pred, y_true, classes=CLASSES, epsilon=1e-7)
    np.testing.assert_allclose(np.asarray(loss), np.asarray(ref),
                               rtol=1e-5, atol=1e-6)

    # case 2: ragged batch, multi-step grid + 2-way parallel split + padding
    N2 = 300
    k_pred2, k_true2 = jax.random.split(jax.random.PRNGKey(1))
    y_pred2 = jax.random.normal(k_pred2, (N2, CLASSES), dtype=jnp.float32)
    y_true2 = jax.random.randint(k_true2, (N2,), 0, CLASSES, dtype=jnp.int32)
    loss2 = f1_loss(y_pred2, y_true2, classes=CLASSES, epsilon=1e-7,
                    tile_n=128)
    jax.block_until_ready(loss2)
    ref2 = _f1_loss_ref(y_pred2, y_true2, classes=CLASSES, epsilon=1e-7)
    np.testing.assert_allclose(np.asarray(loss2), np.asarray(ref2),
                               rtol=1e-5, atol=1e-6)

    # case 3: larger ragged batch with default tiling (default code path)
    N3 = 5000
    k_pred3, k_true3 = jax.random.split(jax.random.PRNGKey(2))
    y_pred3 = jax.random.normal(k_pred3, (N3, CLASSES), dtype=jnp.float32)
    y_true3 = jax.random.randint(k_true3, (N3,), 0, CLASSES, dtype=jnp.int32)
    loss3 = f1_loss(y_pred3, y_true3, classes=CLASSES, epsilon=1e-7)
    jax.block_until_ready(loss3)
    ref3 = _f1_loss_ref(y_pred3, y_true3, classes=CLASSES, epsilon=1e-7)
    np.testing.assert_allclose(np.asarray(loss3), np.asarray(ref3),
                               rtol=1e-5, atol=1e-6)

    print("KERNEL_OK")
</pallas_src>

<mosaic_0001>
module attributes {stable_mosaic.version = 11 : i64} {
  func.func @_f1_partial_kernel(%arg0: i32, %arg1: i32, %arg2: memref<18x128xf32, #tpu.memory_space<vmem>>, %arg3: memref<1x128xi32, #tpu.memory_space<vmem>>, %arg4: memref<1x18x128xf32, #tpu.memory_space<vmem>>, %arg5: memref<1x18x128xf32, #tpu.memory_space<vmem>>) attributes {dimension_semantics = [#tpu.dimension_semantics<parallel>, #tpu.dimension_semantics<arbitrary>], iteration_bounds = array<i64: 1, 1>, scalar_prefetch = 0 : i64, scratch_operands = 0 : i64, tpu.core_type = #tpu.core_type<tc>, window_params = [{transform_indices = @transform_0, window_bounds = array<i64: 18, 128>}, {transform_indices = @transform_1, window_bounds = array<i64: 1, 128>}, {transform_indices = @transform_2, window_bounds = array<i64: 1, 18, 128>}, {transform_indices = @transform_3, window_bounds = array<i64: 1, 18, 128>}]} {
    %c0_i32 = arith.constant 0 : i32
    %0 = arith.cmpi eq, %arg1, %c0_i32 : i32
    %1 = arith.extui %0 : i1 to i32
    %c0_i32_0 = arith.constant 0 : i32
    %2 = arith.cmpi ne, %1, %c0_i32_0 : i32
    scf.if %2 {
      %cst_19 = arith.constant 0.000000e+00 : f32
      %37 = vector.broadcast %cst_19 : f32 to vector<18x128xf32>
      %c0_20 = arith.constant 0 : index
      %c0_21 = arith.constant 0 : index
      %c0_22 = arith.constant 0 : index
      %38 = vector.load %arg4[%c0_20, %c0_21, %c0_22] : memref<1x18x128xf32, #tpu.memory_space<vmem>>, vector<1x18x128xf32>
      %39 = vector.shape_cast %38 : vector<1x18x128xf32> to vector<18x128xf32>
      %40 = vector.shape_cast %37 : vector<18x128xf32> to vector<1x18x128xf32>
      tpu.vector_store %arg4[%c0_20, %c0_21, %c0_22], %40 {strides = array<i32>} : memref<1x18x128xf32, #tpu.memory_space<vmem>>, vector<1x18x128xf32>,
      %cst_23 = arith.constant 0.000000e+00 : f32
      %41 = vector.broadcast %cst_23 : f32 to vector<18x128xf32>
      %c0_24 = arith.constant 0 : index
      %c0_25 = arith.constant 0 : index
      %c0_26 = arith.constant 0 : index
      %42 = vector.load %arg5[%c0_24, %c0_25, %c0_26] : memref<1x18x128xf32, #tpu.memory_space<vmem>>, vector<1x18x128xf32>
      %43 = vector.shape_cast %42 : vector<1x18x128xf32> to vector<18x128xf32>
      %44 = vector.shape_cast %41 : vector<18x128xf32> to vector<1x18x128xf32>
      tpu.vector_store %arg5[%c0_24, %c0_25, %c0_26], %44 {strides = array<i32>} : memref<1x18x128xf32, #tpu.memory_space<vmem>>, vector<1x18x128xf32>,
    } else {
    }
    %c0 = arith.constant 0 : index
    %c0_1 = arith.constant 0 : index
    %3 = vector.load %arg2[%c0, %c0_1] : memref<18x128xf32, #tpu.memory_space<vmem>>, vector<18x128xf32>
    %c0_2 = arith.constant 0 : index
    %c0_3 = arith.constant 0 : index
    %4 = vector.load %arg3[%c0_2, %c0_3] : memref<1x128xi32, #tpu.memory_space<vmem>>, vector<1x128xi32>
    %cst = arith.constant dense<0xFF800000> : vector<128xf32>
    %5 = vector.multi_reduction <maximumf>, %3, %cst [0] : vector<18x128xf32> to vector<128xf32>
    %6 = vector.shape_cast %5 : vector<128xf32> to vector<1x128xf32>
    %7 = vector.broadcast %6 : vector<1x128xf32> to vector<18x128xf32>
    %8 = arith.subf %3, %7 : vector<18x128xf32>
    %9 = math.exp %8 : vector<18x128xf32>
    %cst_4 = arith.constant dense<0.000000e+00> : vector<128xf32>
    %10 = vector.multi_reduction <add>, %9, %cst_4 [0] : vector<18x128xf32> to vector<128xf32>
    %11 = vector.shape_cast %10 : vector<128xf32> to vector<1x128xf32>
    %12 = tpu.reciprocal %11 {approx = true} : vector<1x128xf32> -> vector<1x128xf32>
    %13 = arith.mulf %11, %12 : vector<1x128xf32>
    %cst_5 = arith.constant 2.000000e+00 : f32
    %14 = vector.broadcast %cst_5 : f32 to vector<1x128xf32>
    %15 = arith.subf %14, %13 : vector<1x128xf32>
    %16 = arith.mulf %12, %15 : vector<1x128xf32>
    %17 = vector.broadcast %16 : vector<1x128xf32> to vector<18x128xf32>
    %18 = arith.mulf %9, %17 : vector<18x128xf32>
    %19 = tpu.iota {dimensions = array<i32: 0>} : vector<18x1xi32>
    %20 = vector.broadcast %4 : vector<1x128xi32> to vector<18x128xi32>
    %21 = vector.broadcast %19 : vector<18x1xi32> to vector<18x128xi32>
    %22 = arith.cmpi eq, %20, %21 : vector<18x128xi32>
    %c0_6 = arith.constant 0 : index
    %c0_7 = arith.constant 0 : index
    %c0_8 = arith.constant 0 : index
    %23 = vector.load %arg4[%c0_6, %c0_7, %c0_8] : memref<1x18x128xf32, #tpu.memory_space<vmem>>, vector<1x18x128xf32>
    %24 = vector.shape_cast %23 : vector<1x18x128xf32> to vector<18x128xf32>
    %cst_9 = arith.constant 0.000000e+00 : f32
    %25 = vector.broadcast %cst_9 : f32 to vector<18x128xf32>
    %26 = arith.select %22, %18, %25 : vector<18x128xi1>, vector<18x128xf32>
    %27 = arith.addf %24, %26 : vector<18x128xf32>
    %c0_10 = arith.constant 0 : index
    %c0_11 = arith.constant 0 : index
    %c0_12 = arith.constant 0 : index
    %28 = vector.load %arg4[%c0_10, %c0_11, %c0_12] : memref<1x18x128xf32, #tpu.memory_space<vmem>>, vector<1x18x128xf32>
    %29 = vector.shape_cast %28 : vector<1x18x128xf32> to vector<18x128xf32>
    %30 = vector.shape_cast %27 : vector<18x128xf32> to vector<1x18x128xf32>
    tpu.vector_store %arg4[%c0_10, %c0_11, %c0_12], %30 {strides = array<i32>} : memref<1x18x128xf32, #tpu.memory_space<vmem>>, vector<1x18x128xf32>,
    %c0_13 = arith.constant 0 : index
    %c0_14 = arith.constant 0 : index
    %c0_15 = arith.constant 0 : index
    %31 = vector.load %arg5[%c0_13, %c0_14, %c0_15] : memref<1x18x128xf32, #tpu.memory_space<vmem>>, vector<1x18x128xf32>
    %32 = vector.shape_cast %31 : vector<1x18x128xf32> to vector<18x128xf32>
    %33 = arith.addf %32, %18 : vector<18x128xf32>
    %c0_16 = arith.constant 0 : index
    %c0_17 = arith.constant 0 : index
    %c0_18 = arith.constant 0 : index
    %34 = vector.load %arg5[%c0_16, %c0_17, %c0_18] : memref<1x18x128xf32, #tpu.memory_space<vmem>>, vector<1x18x128xf32>
    %35 = vector.shape_cast %34 : vector<1x18x128xf32> to vector<18x128xf32>
    %36 = vector.shape_cast %33 : vector<18x128xf32> to vector<1x18x128xf32>
    tpu.vector_store %arg5[%c0_16, %c0_17, %c0_18], %36 {strides = array<i32>} : memref<1x18x128xf32, #tpu.memory_space<vmem>>, vector<1x18x128xf32>,
    return
  }
  func.func @transform_0(%arg0: i32, %arg1: i32) -> (i32, i32) {
    %c1_i32 = arith.constant 1 : i32
    %0 = arith.muli %arg0, %c1_i32 : i32
    %1 = arith.addi %0, %arg1 : i32
    %c0_i32 = arith.constant 0 : i32
    %c0_i32_0 = arith.constant 0 : i32
    return %c0_i32, %1 : i32, i32
  }
  func.func @transform_1(%arg0: i32, %arg1: i32) -> (i32, i32) {
    %c1_i32 = arith.constant 1 : i32
    %0 = arith.muli %arg0, %c1_i32 : i32
    %1 = arith.addi %0, %arg1 : i32
    %c0_i32 = arith.constant 0 : i32
    %c0_i32_0 = arith.constant 0 : i32
    return %c0_i32, %1 : i32, i32
  }
  func.func @transform_2(%arg0: i32, %arg1: i32) -> (i32, i32, i32) {
    %c0_i32 = arith.constant 0 : i32
    %c0_i32_0 = arith.constant 0 : i32
    %c0_i32_1 = arith.constant 0 : i32
    return %arg0, %c0_i32, %c0_i32_0 : i32, i32, i32
  }
  func.func @transform_3(%arg0: i32, %arg1: i32) -> (i32, i32, i32) {
    %c0_i32 = arith.constant 0 : i32
    %c0_i32_0 = arith.constant 0 : i32
    %c0_i32_1 = arith.constant 0 : i32
    return %arg0, %c0_i32, %c0_i32_0 : i32, i32, i32
  }
}

</mosaic_0001>

<llo_original>
// kernel: tpu_custom_call.1
$region0: #{tpu_custom_call.1}
  #allocation0 [shape = 'u32[]', space=smem, size = 0x4, offset = 0x4, fixed_abs, tag = 'smem constant byte address 0x4 - core index']
  #allocation1 [shape = 'u32[72,128]{1,0:T(1,128)}', space=vmem, size = 0x9000, scoped, tag = 'internal scratch']
  %s0 = inlined_call_operand.hbm [shape: f32[18,128], index: 0, kind: input, shape index: {}]
  %s1 = inlined_call_operand.hbm [shape: s32[1,128], index: 1, kind: input, shape index: {}]
  %s2 = inlined_call_operand.vmem [shape: f32[1,18,128], index: 2, kind: output, shape index: {0}]
  %s3 = inlined_call_operand.vmem [shape: f32[1,18,128], index: 3, kind: output, shape index: {1}]
  %4 = xla_tuple %s2, %s3
  %s5 = sld [smem:[#allocation0]]
  $region38: #{tpu_custom_call.1} parent=0
    _
  %s7 = ssub.s32 1, %s5
  %s8 = scalar_select 0, %s7, %s5
  $region1: #{tpu_custom_call.1} parent=0
    #allocation2 [shape = 'u8[12288]{0}', space=vmem, size = 0x3000, scoped, tag = 'input window, operand 0, single buffered']
    #allocation3 [shape = 's32[1]{0}', space=sflag, size = 0x4, scoped, tag = 'scoped memory for tpu_custom_call.1']
    #allocation4 [shape = 'u8[512]{0}', space=vmem, size = 0x400, scoped, tag = 'input window, operand 1, single buffered']
    #allocation5 [shape = 's32[1]{0}', space=sflag, size = 0x4, scoped, tag = 'scoped memory for tpu_custom_call.1']
    %9 = vsyncpa [#allocation3], 0
    %10 = vsyncpa [#allocation5], 0
    // Predicated region
    $region2: #{tpu_custom_call.1} parent=1 // pred_check
      _
    $region3: #{tpu_custom_call.1} parent=1 // pred_check_branch
      %12 = sbr.rel (0) target = $region5
    $region4: #{tpu_custom_call.1} parent=1 // pred_region
      %s13 = sadd.s32 0, 0
      %15 = vsyncadd [#allocation3], 0
      %s16 = smul.addr %s13, 8
      %s17 = scalar_lea.hbm %s0, %s16
      %s18 = sshll.u32 %s17, 4
      %s19 = int_to_ptr.hbm [resolvable:$true] %s18
      %s20 = sshll.u32 [#allocation2], 4
      %s21 = int_to_ptr.vmem [resolvable:$true] %s20
      %26 = dma.hbm_to_vmem [thread:$0]  %s19, 384, %s21, [#allocation3], 128, 128, 8
    $region5: #{tpu_custom_call.1} parent=1 // pred_fallthru
      _
    // Predicated region
    $region6: #{tpu_custom_call.1} parent=1 // pred_check
      _
    $region7: #{tpu_custom_call.1} parent=1 // pred_check_branch
      %28 = sbr.rel (0) target = $region9
    $region8: #{tpu_custom_call.1} parent=1 // pred_region
      %s29 = sadd.s32 0, 0
      %31 = vsyncadd [#allocation5], 0
      %s32 = scalar_lea.hbm %s1, %s29
      %s34 = sshll.u32 %s32, 4
      %s35 = int_to_ptr.hbm [resolvable:$true] %s34
      %s36 = sshll.u32 [#allocation4], 4
      %s37 = int_to_ptr.vmem [resolvable:$true] %s36
      %39 = dma.hbm_to_vmem [thread:$0]  %s35, 16, %s37, [#allocation5]
    $region9: #{tpu_custom_call.1} parent=1 // pred_fallthru
      _
    // Predicated region
    $region10: #{tpu_custom_call.1} parent=1 // pred_check
      _
    $region11: #{tpu_custom_call.1} parent=1 // pred_check_branch
      %41 = sbr.rel (0) target = $region13
    $region12: #{tpu_custom_call.1} parent=1 // pred_region
      %43 = dma.done [#allocation3], 384
    $region13: #{tpu_custom_call.1} parent=1 // pred_fallthru
      _
    // Predicated region
    $region14: #{tpu_custom_call.1} parent=1 // pred_check
      _
    $region15: #{tpu_custom_call.1} parent=1 // pred_check_branch
      %45 = sbr.rel (0) target = $region17
    $region16: #{tpu_custom_call.1} parent=1 // pred_region
      %47 = dma.done [#allocation5], 16
    $region17: #{tpu_custom_call.1} parent=1 // pred_fallthru
      _
    %s48 = sadd.s32 0, 0
    %s49 = sadd.s32 0, 0
    %p50 = scmp.eq.s32.totalorder 0, 0
    // Predicated region
    $region18: #{tpu_custom_call.1} parent=1 // pred_check
      %p51 = pneg %p50
    $region19: #{tpu_custom_call.1} parent=1 // pred_check_branch
      %53 = sbr.rel (%p51) target = $region21
    $region20: #{tpu_custom_call.1} parent=1 // pred_region
      %54 = vst [vmem:[%s2] sm:$0xff] 0.0
      %55 = vst [vmem:[%s2 + $0x8] sm:$0xff] 0.0
      %56 = vst [vmem:[%s2 + $0x10] sm:$0x3] 0.0
      %57 = vst [vmem:[%s3] sm:$0xff] 0.0
      %58 = vst [vmem:[%s3 + $0x8] sm:$0xff] 0.0
      %59 = vst [vmem:[%s3 + $0x10] sm:$0x3] 0.0
    $region21: #{tpu_custom_call.1} parent=1 // pred_fallthru
      _
    %v60 = vld [vmem:[#allocation2] sm:$0xff]
    %v61 = vld [vmem:[#allocation2 + $0x8] sm:$0xff]
    %v62 = vld [vmem:[#allocation2 + $0x10] sm:$0x3]
    %v63 = vld [vmem:[#allocation4] sm:$0x1]
    %vm64 = vcmask 1041408
    %v65 = vsel %vm64, %v62, -inf
    %v66 = vmax.f32 %v60, %v61
    %v67 = vmax.f32 %v66, %v65
    %v68 = vrot.slane %v67, 4
    %v69 = vmax.f32 %v67, %v68
    %v70 = vrot.slane %v69, 2
    %v71 = vmax.f32 %v69, %v70
    %v72 = vrot.slane %v71, 1
    %v73 = vmax.f32 %v71, %v72
    %v74 = vsub.f32 %v60, %v73
    %v75 = vsub.f32 %v61, %v73
    %v76 = vsub.f32 %v62, %v73
    %v77 = vmul.f32 %v74, 1.442695
    %v78 = vpow.pop %v77
    %v79 = vmul.f32 %v75, 1.442695
    %v80 = vpow.pop %v79
    %v81 = vmul.f32 %v76, 1.442695
    %v82 = vpow.pop %v81
    %v83 = vadd.f32 %v78, %v80
    %v84 = vsel %vm64, %v82, 0.0
    %v85 = vadd.f32 %v83, %v84
    %v86 = vrot.slane %v85, 4
    %v87 = vadd.f32 %v85, %v86
    %v88 = vrot.slane %v87, 2
    %v89 = vadd.f32 %v87, %v88
    %v90 = vrot.slane %v89, 1
    %v91 = vadd.f32 %v89, %v90
    %v92 = vrcp.pop %v91
    %v93 = vmul.f32 %v91, %v92
    %v94 = vsub.f32 2.0, %v93
    %v95 = vmul.f32 %v92, %v94
    %v96 = vmul.f32 %v78, %v95
    %v97 = vmul.f32 %v80, %v95
    %v98 = vmul.f32 %v82, %v95
    %v99 = vlaneseq
    %v100 = vshrl.u32 %v99, 7
    %v101 = vadd.s32 %v100, 8
    %v102 = vadd.s32 %v100, 16
    %v103 = vperm.slane %v63, 0
    %vm104 = vcmp.eq.s32.totalorder %v103, %v100
    %vm105 = vcmp.eq.s32.totalorder %v103, %v101
    %vm106 = vcmp.eq.s32.totalorder %v103, %v102
    %v107 = vld [vmem:[%s2] sm:$0xff]
    %v108 = vld [vmem:[%s2 + $0x8] sm:$0xff]
    %v109 = vld [vmem:[%s2 + $0x10] sm:$0x3]
    %v110 = vsel %vm104, %v96, 0.0
    %v111 = vsel %vm105, %v97, 0.0
    %v112 = vsel %vm106, %v98, 0.0
    %v113 = vadd.f32 %v107, %v110
    %v114 = vadd.f32 %v108, %v111
    %v115 = vadd.f32 %v109, %v112
    %116 = vst [vmem:[%s2] sm:$0xff] %v113
    %117 = vst [vmem:[%s2 + $0x8] sm:$0xff] %v114
    %118 = vst [vmem:[%s2 + $0x10] sm:$0x3] %v115
    %v119 = vld [vmem:[%s3] sm:$0xff]
    %v120 = vld [vmem:[%s3 + $0x8] sm:$0xff]
    %v121 = vld [vmem:[%s3 + $0x10] sm:$0x3]
    %v122 = vadd.f32 %v119, %v96
    %v123 = vadd.f32 %v120, %v97
    %v124 = vadd.f32 %v121, %v98
    %125 = vst [vmem:[%s3] sm:$0xff] %v122
    %126 = vst [vmem:[%s3 + $0x8] sm:$0xff] %v123
    %127 = vst [vmem:[%s3 + $0x10] sm:$0x3] %v124
    // Predicated region
    $region22: #{tpu_custom_call.1} parent=1 // pred_check
      _
    $region23: #{tpu_custom_call.1} parent=1 // pred_check_branch
      %129 = sbr.rel (0) target = $region25
    $region24: #{tpu_custom_call.1} parent=1 // pred_region
      _
    $region25: #{tpu_custom_call.1} parent=1 // pred_fallthru
      _
    // Predicated region
    $region26: #{tpu_custom_call.1} parent=1 // pred_check
      _
    $region27: #{tpu_custom_call.1} parent=1 // pred_check_branch
      %131 = sbr.rel (0) target = $region29
    $region28: #{tpu_custom_call.1} parent=1 // pred_region
      _
    $region29: #{tpu_custom_call.1} parent=1 // pred_fallthru
      _
    // Predicated region
    $region30: #{tpu_custom_call.1} parent=1 // pred_check
      _
    $region31: #{tpu_custom_call.1} parent=1 // pred_check_branch
      %133 = sbr.rel (0) target = $region33
    $region32: #{tpu_custom_call.1} parent=1 // pred_region
      _
    $region33: #{tpu_custom_call.1} parent=1 // pred_fallthru
      _
    // Predicated region
    $region34: #{tpu_custom_call.1} parent=1 // pred_check
      _
    $region35: #{tpu_custom_call.1} parent=1 // pred_check_branch
      %135 = sbr.rel (0) target = $region37
    $region36: #{tpu_custom_call.1} parent=1 // pred_region
      _
    $region37: #{tpu_custom_call.1} parent=1 // pred_fallthru
      _
    %136 = vsyncpa [#allocation3], 1
    %137 = vsyncpa [#allocation5], 1

</llo_original>
